<compile_context>
chip_gen: v7x
topology: tpu7x:2x2x1
jax: 0.10.0
libtpu: 0.0.40
codegen_flags: <defaults>
</compile_context>

<pallas_src>
import numpy as np

import jax
import jax.numpy as jnp
from jax.experimental import pallas as pl
from jax.experimental.pallas import tpu as pltpu


# Haar sign patterns sgn[c, i, j] (matches the PyTorch haar_weights, pre *0.5)
_SIGNS = np.array(
    [[[1.0, 1.0], [1.0, 1.0]],
     [[1.0, -1.0], [1.0, -1.0]],
     [[1.0, 1.0], [-1.0, -1.0]],
     [[1.0, -1.0], [-1.0, 1.0]]], np.float32)


def _choose_fold(H, W):
    """Pick r | H so that L = r*W gives lane-dense tiles while keeping the
    constant B (64*L^2 bytes) small."""
    divisors = [r for r in range(1, H + 1) if H % r == 0]
    for r in divisors:                       # lane-aligned loads AND stores
        L = r * W
        if L % 128 == 0 and L <= 256:
            return r
    for r in divisors:                       # at least reasonably wide tiles
        if r * W >= 128:
            return r
    return divisors[-1]                      # tiny images: fold everything


def _pick_m_tile(m, ng):
    """Sublane-aligned row-tile that divides m; split rows when groups are few."""
    if m % 8 != 0:
        return m                             # full-dim block (always legal)
    t = m // 2 if (ng < 4 and m >= 16) else min(m, 256)
    t = max(8, (t // 8) * 8)
    while m % t != 0:
        t -= 8
    return t


def _build_fold_matrix(W, r):
    """B[c, p, q] = 0.5*sgn[c,i,j] with p = (row-in-fold)*W + w and
    q = (2*(p//W)+i)*2W + 2*(p%W)+j.  Maps a folded input row (L = r*W lanes)
    to its folded output row (4L lanes) with sign + 2x2 interleave baked in."""
    L = r * W
    B = np.zeros((4, L, 4 * L), np.float32)
    p = np.arange(L)
    hrow = p // W
    w = p % W
    for c in range(4):
        for i in range(2):
            for j in range(2):
                q = (2 * hrow + i) * (2 * W) + 2 * w + j
                B[c, p, q] = 0.5 * _SIGNS[c, i, j]
    return jnp.asarray(B)


def _compiler_params(x_block, o_block, b_shape):
    est = 4 * (2 * int(np.prod(x_block)) + 2 * int(np.prod(o_block))
               + 2 * int(np.prod(b_shape))) + (2 << 20)
    kwargs = dict(dimension_semantics=("parallel", "parallel"))
    if est > (16 << 20):                     # above smallest default scoped VMEM
        kwargs["vmem_limit_bytes"] = min(est, 100 << 20)
    return pltpu.CompilerParams(**kwargs)


# ----------------------------------------------------------------------------
# Kernels
# ----------------------------------------------------------------------------
def haar_up_kernel(x_ref, b_ref, o_ref):
    """Haar synthesis (transposed conv, stride 2).

    x_ref: (1, 4, m_tile, L)   -- 4 Haar channels of one group, rows folded
    b_ref: (4, L, 4L)          -- sign + 2x2-interleave scatter matrices
    o_ref: (1, m_tile, 4L)     -- row-major identical to the NCHW output slab
    """
    acc = jnp.dot(x_ref[0, 0], b_ref[0], preferred_element_type=jnp.float32)
    for c in range(1, 4):
        acc = acc + jnp.dot(x_ref[0, c], b_ref[c],
                            preferred_element_type=jnp.float32)
    o_ref[0] = acc.astype(o_ref.dtype)


def haar_down_kernel(x_ref, bt_ref, o_ref):
    """Haar analysis (stride-2 conv, rev=True path).

    x_ref:  (1, m_tile, 4L)    -- row-major view of the (2*, 2W) input slab
    bt_ref: (4, 4L, L)         -- transposed synthesis matrices
    o_ref:  (1, 4, m_tile, L)
    """
    xb = x_ref[0]
    for c in range(4):
        o_ref[0, c] = jnp.dot(
            xb, bt_ref[c], preferred_element_type=jnp.float32).astype(o_ref.dtype)


# ----------------------------------------------------------------------------
# Wrapper (== HaarUpsampling.forward)
# ----------------------------------------------------------------------------
def haar_upsampling_forward(x, rev=False):
    x = x.astype(jnp.float32)

    if not rev:
        N, C, H, W = x.shape
        assert C % 4 == 0, "input channels must be a multiple of 4"
        Cg = C // 4
        NG = N * Cg
        r = _choose_fold(H, W)
        L = r * W
        m = H // r
        m_tile = _pick_m_tile(m, NG)

        xg = x.reshape(NG, 4, m, L)                    # free reshape
        B = _build_fold_matrix(W, r)                   # (4, L, 4L) constant

        x_block = (1, 4, m_tile, L)
        o_block = (1, m_tile, 4 * L)
        out_flat = pl.pallas_call(
            haar_up_kernel,
            out_shape=jax.ShapeDtypeStruct((NG, m, 4 * L), jnp.float32),
            grid=(NG, m // m_tile),
            in_specs=[
                pl.BlockSpec(x_block, lambda g, h: (g, 0, h, 0)),
                pl.BlockSpec((4, L, 4 * L), lambda g, h: (0, 0, 0)),
            ],
            out_specs=pl.BlockSpec(o_block, lambda g, h: (g, h, 0)),
            compiler_params=_compiler_params(x_block, o_block, B.shape),
        )(xg, B)

        # (NG, m, 4L) row-major == (N, Cg, 2H, 2W) row-major -> free reshape.
        return out_flat.reshape(N, Cg, 2 * H, 2 * W)

    # rev=True: Haar analysis / downsampling
    N, Cg, Hin, Win = x.shape
    assert Hin % 2 == 0 and Win % 2 == 0
    H, W = Hin // 2, Win // 2
    NG = N * Cg
    r = _choose_fold(H, W)
    L = r * W
    m = H // r
    m_tile = _pick_m_tile(m, NG)

    x_flat = x.reshape(NG, m, 4 * L)                   # free reshape
    Bt = _build_fold_matrix(W, r).transpose(0, 2, 1)   # (4, 4L, L)

    x_block = (1, m_tile, 4 * L)
    o_block = (1, 4, m_tile, L)
    out = pl.pallas_call(
        haar_down_kernel,
        out_shape=jax.ShapeDtypeStruct((NG, 4, m, L), jnp.float32),
        grid=(NG, m // m_tile),
        in_specs=[
            pl.BlockSpec(x_block, lambda g, h: (g, h, 0)),
            pl.BlockSpec((4, 4 * L, L), lambda g, h: (0, 0, 0)),
        ],
        out_specs=pl.BlockSpec(o_block, lambda g, h: (g, 0, h, 0)),
        compiler_params=_compiler_params(x_block, o_block, Bt.shape),
    )(x_flat, Bt)

    return out.reshape(N, 4 * Cg, H, W)


# ----------------------------------------------------------------------------
# Pure-JAX reference (mirrors F.conv_transpose2d with the Haar weights)
# ----------------------------------------------------------------------------
def haar_upsampling_reference(x):
    N, C, H, W = x.shape
    Cg = C // 4
    xr = x.reshape(N, Cg, 4, H, W).astype(jnp.float32)
    y = jnp.einsum('ngchw,cij->nghiwj', xr, 0.5 * jnp.asarray(_SIGNS))
    return y.reshape(N, Cg, 2 * H, 2 * W)


# ----------------------------------------------------------------------------
if __name__ == "__main__":
    N, C, H, W = 2, 4, 16, 16
    key = jax.random.PRNGKey(0)
    x = jax.random.normal(key, (N, C, H, W), jnp.float32)       # NCHW

    fwd = jax.jit(haar_upsampling_forward)
    up = jax.block_until_ready(fwd(x))
    assert up.shape == (N, C // 4, 2 * H, 2 * W), up.shape

    # numerical check against the plain-JAX transposed-conv reference
    ref = haar_upsampling_reference(x)
    assert bool(jnp.allclose(up, ref, atol=1e-5, rtol=1e-5))

    # rev=True path: Haar analysis is the exact inverse of the synthesis
    rev = jax.jit(lambda y: haar_upsampling_forward(y, rev=True))
    back = jax.block_until_ready(rev(up))
    assert back.shape == x.shape, back.shape
    assert bool(jnp.allclose(back, x, atol=1e-5, rtol=1e-5))

    assert bool(jnp.all(jnp.isfinite(up)))
    print("KERNEL_OK")
</pallas_src>

<mosaic_0001>
module attributes {stable_mosaic.version = 11 : i64} {
  func.func @haar_up_kernel(%arg0: i32, %arg1: i32, %arg2: memref<1x4x2x128xf32, #tpu.memory_space<vmem>>, %arg3: memref<4x128x512xf32, #tpu.memory_space<vmem>>, %arg4: memref<1x2x512xf32, #tpu.memory_space<vmem>>) attributes {dimension_semantics = [#tpu.dimension_semantics<parallel>, #tpu.dimension_semantics<parallel>], iteration_bounds = array<i64: 2, 1>, scalar_prefetch = 0 : i64, scratch_operands = 0 : i64, tpu.core_type = #tpu.core_type<tc>, window_params = [{transform_indices = @transform_0, window_bounds = array<i64: 1, 4, 2, 128>}, {pipeline_mode = #tpu.pipeline_mode<synchronous>, transform_indices = @transform_1, window_bounds = array<i64: 4, 128, 512>}, {transform_indices = @transform_2, window_bounds = array<i64: 1, 2, 512>}]} {
    %c0 = arith.constant 0 : index
    %c0_0 = arith.constant 0 : index
    %c0_1 = arith.constant 0 : index
    %c0_2 = arith.constant 0 : index
    %0 = vector.load %arg2[%c0, %c0_0, %c0_1, %c0_2] : memref<1x4x2x128xf32, #tpu.memory_space<vmem>>, vector<1x1x2x128xf32>
    %1 = vector.shape_cast %0 : vector<1x1x2x128xf32> to vector<2x128xf32>
    %c0_3 = arith.constant 0 : index
    %c0_4 = arith.constant 0 : index
    %c0_5 = arith.constant 0 : index
    %2 = vector.load %arg3[%c0_3, %c0_4, %c0_5] : memref<4x128x512xf32, #tpu.memory_space<vmem>>, vector<1x128x512xf32>
    %3 = vector.shape_cast %2 : vector<1x128x512xf32> to vector<128x512xf32>
    %cst = arith.constant dense<0.000000e+00> : vector<2x512xf32>
    %4 = tpu.matmul %1, %3, %cst {dimension_numbers = #tpu.dot_dimension_numbers<[1], [0], [0], [1], [0, 0, 1, 1], [], []>} : vector<2x128xf32>, vector<128x512xf32>, vector<2x512xf32> -> vector<2x512xf32>
    %c0_6 = arith.constant 0 : index
    %c1 = arith.constant 1 : index
    %c0_7 = arith.constant 0 : index
    %c0_8 = arith.constant 0 : index
    %5 = vector.load %arg2[%c0_6, %c1, %c0_7, %c0_8] : memref<1x4x2x128xf32, #tpu.memory_space<vmem>>, vector<1x1x2x128xf32>
    %6 = vector.shape_cast %5 : vector<1x1x2x128xf32> to vector<2x128xf32>
    %c1_9 = arith.constant 1 : index
    %c0_10 = arith.constant 0 : index
    %c0_11 = arith.constant 0 : index
    %7 = vector.load %arg3[%c1_9, %c0_10, %c0_11] : memref<4x128x512xf32, #tpu.memory_space<vmem>>, vector<1x128x512xf32>
    %8 = vector.shape_cast %7 : vector<1x128x512xf32> to vector<128x512xf32>
    %cst_12 = arith.constant dense<0.000000e+00> : vector<2x512xf32>
    %9 = tpu.matmul %6, %8, %cst_12 {dimension_numbers = #tpu.dot_dimension_numbers<[1], [0], [0], [1], [0, 0, 1, 1], [], []>} : vector<2x128xf32>, vector<128x512xf32>, vector<2x512xf32> -> vector<2x512xf32>
    %10 = arith.addf %4, %9 : vector<2x512xf32>
    %c0_13 = arith.constant 0 : index
    %c2 = arith.constant 2 : index
    %c0_14 = arith.constant 0 : index
    %c0_15 = arith.constant 0 : index
    %11 = vector.load %arg2[%c0_13, %c2, %c0_14, %c0_15] : memref<1x4x2x128xf32, #tpu.memory_space<vmem>>, vector<1x1x2x128xf32>
    %12 = vector.shape_cast %11 : vector<1x1x2x128xf32> to vector<2x128xf32>
    %c2_16 = arith.constant 2 : index
    %c0_17 = arith.constant 0 : index
    %c0_18 = arith.constant 0 : index
    %13 = vector.load %arg3[%c2_16, %c0_17, %c0_18] : memref<4x128x512xf32, #tpu.memory_space<vmem>>, vector<1x128x512xf32>
    %14 = vector.shape_cast %13 : vector<1x128x512xf32> to vector<128x512xf32>
    %cst_19 = arith.constant dense<0.000000e+00> : vector<2x512xf32>
    %15 = tpu.matmul %12, %14, %cst_19 {dimension_numbers = #tpu.dot_dimension_numbers<[1], [0], [0], [1], [0, 0, 1, 1], [], []>} : vector<2x128xf32>, vector<128x512xf32>, vector<2x512xf32> -> vector<2x512xf32>
    %16 = arith.addf %10, %15 : vector<2x512xf32>
    %c0_20 = arith.constant 0 : index
    %c3 = arith.constant 3 : index
    %c0_21 = arith.constant 0 : index
    %c0_22 = arith.constant 0 : index
    %17 = vector.load %arg2[%c0_20, %c3, %c0_21, %c0_22] : memref<1x4x2x128xf32, #tpu.memory_space<vmem>>, vector<1x1x2x128xf32>
    %18 = vector.shape_cast %17 : vector<1x1x2x128xf32> to vector<2x128xf32>
    %c3_23 = arith.constant 3 : index
    %c0_24 = arith.constant 0 : index
    %c0_25 = arith.constant 0 : index
    %19 = vector.load %arg3[%c3_23, %c0_24, %c0_25] : memref<4x128x512xf32, #tpu.memory_space<vmem>>, vector<1x128x512xf32>
    %20 = vector.shape_cast %19 : vector<1x128x512xf32> to vector<128x512xf32>
    %cst_26 = arith.constant dense<0.000000e+00> : vector<2x512xf32>
    %21 = tpu.matmul %18, %20, %cst_26 {dimension_numbers = #tpu.dot_dimension_numbers<[1], [0], [0], [1], [0, 0, 1, 1], [], []>} : vector<2x128xf32>, vector<128x512xf32>, vector<2x512xf32> -> vector<2x512xf32>
    %22 = arith.addf %16, %21 : vector<2x512xf32>
    %c0_27 = arith.constant 0 : index
    %c0_28 = arith.constant 0 : index
    %c0_29 = arith.constant 0 : index
    %23 = vector.load %arg4[%c0_27, %c0_28, %c0_29] : memref<1x2x512xf32, #tpu.memory_space<vmem>>, vector<1x2x512xf32>
    %24 = vector.shape_cast %23 : vector<1x2x512xf32> to vector<2x512xf32>
    %25 = vector.shape_cast %22 : vector<2x512xf32> to vector<1x2x512xf32>
    tpu.vector_store %arg4[%c0_27, %c0_28, %c0_29], %25 {strides = array<i32>} : memref<1x2x512xf32, #tpu.memory_space<vmem>>, vector<1x2x512xf32>,
    return
  }
  func.func @transform_0(%arg0: i32, %arg1: i32) -> (i32, i32, i32, i32) {
    %c0_i32 = arith.constant 0 : i32
    %c0_i32_0 = arith.constant 0 : i32
    %c0_i32_1 = arith.constant 0 : i32
    return %arg0, %c0_i32, %arg1, %c0_i32_0 : i32, i32, i32, i32
  }
  func.func @transform_1(%arg0: i32, %arg1: i32) -> (i32, i32, i32) {
    %c0_i32 = arith.constant 0 : i32
    %c0_i32_0 = arith.constant 0 : i32
    %c0_i32_1 = arith.constant 0 : i32
    %c0_i32_2 = arith.constant 0 : i32
    return %c0_i32, %c0_i32_0, %c0_i32_1 : i32, i32, i32
  }
  func.func @transform_2(%arg0: i32, %arg1: i32) -> (i32, i32, i32) {
    %c0_i32 = arith.constant 0 : i32
    %c0_i32_0 = arith.constant 0 : i32
    return %arg0, %arg1, %c0_i32 : i32, i32, i32
  }
}

</mosaic_0001>

<llo_original>
// kernel: haar_upsampling_forward.1
$region0: #{haar_upsampling_forward.1}
  #allocation0 [shape = 'u32[]', space=smem, size = 0x4, offset = 0x4, fixed_abs, tag = 'smem constant byte address 0x4 - core index']
  #allocation1 [shape = 'u32[144,128]{1,0:T(1,128)}', space=vmem, size = 0x12000, scoped, tag = 'internal scratch']
  %s0 = inlined_call_operand.vmem [shape: f32[2,4,2,128], index: 0, kind: input, shape index: {}]
  %s1 = inlined_call_operand.hbm [shape: f32[4,128,512], index: 1, kind: input, shape index: {}]
  %s2 = inlined_call_operand.vmem [shape: f32[2,2,512], index: 2, kind: output, shape index: {}]
  %s3 = sld [smem:[#allocation0]]
  $region45: #{haar_upsampling_forward.1} parent=0
    _
  %s5 = ssub.s32 1, %s3
  %s6 = scalar_select 0, %s5, %s3
  $region1: #{haar_upsampling_forward.1} parent=0
    #allocation2 [shape = 'u8[1048576]{0}', space=vmem, size = 0x100000, scoped, tag = 'input window, operand 1, single buffered']
    #allocation3 [shape = 's32[2]{0}', space=sflag, size = 0x8, scoped, tag = 'scoped memory for haar_upsampling_forward.1']
    %7 = vsyncpa [#allocation3], 0
    loop: start=0, step=1, limit=4
    $region2: #{haar_upsampling_forward.1} parent=1 // loop_pre_header
      _
    $region3: #{haar_upsampling_forward.1} parent=1 // loop_header
      %s9 = sphi 0, %s13
      %p10 = scmp.ge.s32.totalorder %s9, 4
      %s16 = sphi 0, %s28
      %s17 = sphi 0, %s24
      %s18 = sphi 0, %s16
      %s19 = sphi 0, %s17
      %s20 = sphi 0, %s18
      %s21 = sphi 0, %s19
      %s33 = sphi 0, %s35
      %s36 = sphi 0, %s33
      %s37 = sphi 0, %s36
      %s53 = sphi 0, %s37
      %s57 = sphi 0, %s57
      %s59 = sphi 0, %s57
      %s60 = sphi 0, %s59
      %s74 = sphi 0, %s60
      %s82 = sphi 0, %s84
      %s85 = sphi 0, %s82
      %s86 = sphi 0, %s85
      %s102 = sphi 0, %s86
    $region4: #{haar_upsampling_forward.1} parent=1 // loop_header_branch
      %12 = sbr.rel (%p10) target = $region8
    $region5: #{haar_upsampling_forward.1} parent=1 // loop_body
      %s14 = ssub.s32 %s9, 1
      %s15 = ssub.s32 %s9, 2
      %s22 = sadd.s32 1, %s17
      %p23 = scmp.ge.s32.totalorder %s22, 1
      %s24 = scalar_select %p23, 0, %s22
      %s25 = sadd.s32 1, %s16
      %s26 = scalar_select %p23, %s25, %s16
      %p27 = scmp.ge.s32.totalorder %s26, 2
      %s28 = scalar_select %p27, 0, %s26
      %s29 = ssub.s32 %s16, %s28
      %s30 = ssub.s32 %s17, %s24
      %s31 = sor.u32 %s29, %s30
      %p32 = scmp.eq.s32.totalorder %s31, 0
      %s34 = sadd.s32 %s33, 1
      %s35 = scalar_select %p32, %s33, %s34
      %p38 = pneg %p32
      %p39 = scmp.eq.s32.totalorder %s9, 1
      %p40 = por %p38, %p39
      %p41 = scmp.ne.s32.totalorder %s33, %s36
      %p42 = scmp.eq.s32.totalorder %s9, 0
      %p43 = por %p41, %p42
      %p44 = scmp.ne.s32.totalorder %s33, %s36
      %p45 = scmp.eq.s32.totalorder %s14, 1
      %p46 = por %p44, %p45
      %p47 = scmp.ne.s32.totalorder %s36, %s37
      %p48 = scmp.eq.s32.totalorder %s14, 0
      %p49 = por %p47, %p48
      %p50 = scmp.ne.s32.totalorder %s36, %s37
      %p51 = scmp.eq.s32.totalorder %s15, 1
      %p52 = por %p50, %p51
      %p54 = scmp.ne.s32.totalorder %s37, %s53
      %p55 = scmp.eq.s32.totalorder %s15, 0
      %p56 = por %p54, %p55
      %s58 = sadd.s32 %s57, 1
      %p61 = scmp.eq.s32.totalorder %s9, 1
      %p62 = scmp.ne.s32.totalorder %s57, %s59
      %p63 = scmp.eq.s32.totalorder %s9, 0
      %p64 = por %p62, %p63
      %p65 = scmp.ne.s32.totalorder %s57, %s59
      %p66 = scmp.eq.s32.totalorder %s14, 1
      %p67 = por %p65, %p66
      %p68 = scmp.ne.s32.totalorder %s59, %s60
      %p69 = scmp.eq.s32.totalorder %s14, 0
      %p70 = por %p68, %p69
      %p71 = scmp.ne.s32.totalorder %s59, %s60
      %p72 = scmp.eq.s32.totalorder %s15, 1
      %p73 = por %p71, %p72
      %p75 = scmp.ne.s32.totalorder %s60, %s74
      %p76 = scmp.eq.s32.totalorder %s15, 0
      %p77 = por %p75, %p76
      %s78 = ssub.s32 %s16, %s28
      %s79 = ssub.s32 %s17, %s24
      %s80 = sor.u32 %s78, %s79
      %p81 = scmp.eq.s32.totalorder %s80, 0
      %s83 = sadd.s32 %s82, 1
      %s84 = scalar_select %p81, %s82, %s83
      %p87 = pneg %p81
      %p88 = scmp.eq.s32.totalorder %s9, 1
      %p89 = por %p87, %p88
      %p90 = scmp.ne.s32.totalorder %s82, %s85
      %p91 = scmp.eq.s32.totalorder %s9, 0
      %p92 = por %p90, %p91
      %p93 = scmp.ne.s32.totalorder %s82, %s85
      %p94 = scmp.eq.s32.totalorder %s14, 1
      %p95 = por %p93, %p94
      %p96 = scmp.ne.s32.totalorder %s85, %s86
      %p97 = scmp.eq.s32.totalorder %s14, 0
      %p98 = por %p96, %p97
      %p99 = scmp.ne.s32.totalorder %s85, %s86
      %p100 = scmp.eq.s32.totalorder %s15, 1
      %p101 = por %p99, %p100
      %p103 = scmp.ne.s32.totalorder %s86, %s102
      %p104 = scmp.eq.s32.totalorder %s15, 0
      %p105 = por %p103, %p104
      %p106 = scmp.le.s32.totalorder 1, %s9
      %p107 = scmp.lt.s32.totalorder %s9, 3
      %p108 = pnand %p106, %p107
      %p109 = pneg %p108
      // Predicated region
      $region9: #{haar_upsampling_forward.1} parent=5 // pred_check
        _
      $region10: #{haar_upsampling_forward.1} parent=5 // pred_check_branch
        %111 = sbr.rel (%p108) target = $region12
      $region11: #{haar_upsampling_forward.1} parent=5 // pred_region
        %s112 = ssub.s32 %s9, 1
        // Predicated region
        $region13: #{haar_upsampling_forward.1} parent=11 // pred_check
          %p113 = pneg %p70
        $region14: #{haar_upsampling_forward.1} parent=11 // pred_check_branch
          %115 = sbr.rel (%p113) target = $region16
        $region15: #{haar_upsampling_forward.1} parent=11 // pred_region
          %s117 = ssub.s32 32768, 32768
          %118 = vsyncadd [#allocation3], %s117
          %s119 = sshll.u32 [#allocation2], 4
          %s120 = int_to_ptr.vmem [resolvable:$true] %s119
          %125 = dma.hbm_to_vmem [thread:$0]  %s1, 32768, %s120, [#allocation3], 512, 512, 32
        $region16: #{haar_upsampling_forward.1} parent=11 // pred_fallthru
          _
      $region12: #{haar_upsampling_forward.1} parent=5 // pred_fallthru
        _
      %p126 = scmp.lt.s32.totalorder %s9, 2
      // Predicated region
      $region17: #{haar_upsampling_forward.1} parent=5 // pred_check
        %p127 = pneg %p126
      $region18: #{haar_upsampling_forward.1} parent=5 // pred_check_branch
        %129 = sbr.rel (%p127) target = $region20
      $region19: #{haar_upsampling_forward.1} parent=5 // pred_region
        // Predicated region
        $region21: #{haar_upsampling_forward.1} parent=19 // pred_check
          %p130 = pneg %p43
        $region22: #{haar_upsampling_forward.1} parent=19 // pred_check_branch
          %132 = sbr.rel (%p130) target = $region24
        $region23: #{haar_upsampling_forward.1} parent=19 // pred_region
          %p133 = scmp.lt.s32.totalorder %s16, 1
          %s134 = scalar_select %p133, %s16, 1
          %p135 = scmp.lt.s32.totalorder %s17, 0
          %s136 = scalar_select %p135, %s17, 0
          %s137 = smul.addr %s134, 4
          %s138 = sadd.s32 %s136, %s137
          %s139 = smul.addr %s138, 2
          %s140 = scalar_lea.vmem %s0, %s139
        $region24: #{haar_upsampling_forward.1} parent=19 // pred_fallthru
          _
      $region20: #{haar_upsampling_forward.1} parent=5 // pred_fallthru
        _
      %p141 = scmp.le.s32.totalorder 1, %s9
      %p142 = scmp.lt.s32.totalorder %s9, 3
      %p143 = pnand %p141, %p142
      %p144 = pneg %p143
      // Predicated region
      $region25: #{haar_upsampling_forward.1} parent=5 // pred_check
        _
      $region26: #{haar_upsampling_forward.1} parent=5 // pred_check_branch
        %146 = sbr.rel (%p143) target = $region28
      $region27: #{haar_upsampling_forward.1} parent=5 // pred_region
        %s147 = ssub.s32 %s9, 1
        // Predicated region
        $region29: #{haar_upsampling_forward.1} parent=27 // pred_check
          %p148 = pneg %p70
        $region30: #{haar_upsampling_forward.1} parent=27 // pred_check_branch
          %150 = sbr.rel (%p148) target = $region32
        $region31: #{haar_upsampling_forward.1} parent=27 // pred_region
          %151 = dma.done [#allocation3], 32768
        $region32: #{haar_upsampling_forward.1} parent=27 // pred_fallthru
          _
        %p152 = scmp.lt.s32.totalorder %s18, 1
        %s153 = scalar_select %p152, %s18, 1
        %p154 = scmp.lt.s32.totalorder %s19, 0
        %s155 = scalar_select %p154, %s19, 0
        %s156 = smul.addr %s153, 4
        %s157 = sadd.s32 %s155, %s156
        %s158 = smul.addr %s157, 2
        %s159 = scalar_lea.vmem %s0, %s158
        %p160 = pneg %p49
        %p161 = pneg %p46
        %p162 = pneg %p70
        %p163 = pneg %p67
        %p164 = pneg %p98
        %p165 = pneg %p95
        %p166 = scmp.lt.s32.totalorder %s18, 1
        %s167 = scalar_select %p166, %s18, 1
        %p168 = scmp.lt.s32.totalorder %s19, 0
        %s169 = scalar_select %p168, %s19, 0
        %s170 = smul.addr %s169, 4
        %s171 = smul.addr %s167, 4
        %s172 = sadd.s32 %s170, %s171
        %s173 = smul.addr %s172, 2
        %s174 = scalar_lea.vmem %s2, %s173
        %p175 = scmp.lt.s32.totalorder %s18, 1
        %s176 = scalar_select %p175, %s18, 1
        %p177 = scmp.lt.s32.totalorder %s19, 0
        %s178 = scalar_select %p177, %s19, 0
        %s179 = smul.addr %s176, 4
        %s180 = sadd.s32 %s178, %s179
        %s181 = smul.addr %s180, 2
        %s182 = scalar_lea.vmem %s0, %s181
        %p183 = scmp.lt.s32.totalorder %s18, 1
        %s184 = scalar_select %p183, %s18, 1
        %p185 = scmp.lt.s32.totalorder %s19, 0
        %s186 = scalar_select %p185, %s19, 0
        %s187 = smul.addr %s186, 4
        %s188 = smul.addr %s184, 4
        %s189 = sadd.s32 %s187, %s188
        %s190 = smul.addr %s189, 2
        %s191 = scalar_lea.vmem %s2, %s190
        %v192 = vld [vmem:[%s182] sm:$0x3]
        %v193 = vld [vmem:[#allocation2] sm:$0xff]
        %v194 = vld [vmem:[#allocation2 + $0x8] sm:$0xff]
        %v195 = vld [vmem:[#allocation2 + $0x10] sm:$0xff]
        %v196 = vld [vmem:[#allocation2 + $0x18] sm:$0xff]
        %v197 = vld [vmem:[#allocation2 + $0x20] sm:$0xff]
        %v198 = vld [vmem:[#allocation2 + $0x28] sm:$0xff]
        %v199 = vld [vmem:[#allocation2 + $0x30] sm:$0xff]
        %v200 = vld [vmem:[#allocation2 + $0x38] sm:$0xff]
        %v201 = vld [vmem:[#allocation2 + $0x40] sm:$0xff]
        %v202 = vld [vmem:[#allocation2 + $0x48] sm:$0xff]
        %v203 = vld [vmem:[#allocation2 + $0x50] sm:$0xff]
        %v204 = vld [vmem:[#allocation2 + $0x58] sm:$0xff]
        %v205 = vld [vmem:[#allocation2 + $0x60] sm:$0xff]
        %v206 = vld [vmem:[#allocation2 + $0x68] sm:$0xff]
        %v207 = vld [vmem:[#allocation2 + $0x70] sm:$0xff]
        %v208 = vld [vmem:[#allocation2 + $0x78] sm:$0xff]
        %v209 = vld [vmem:[#allocation2 + $0x80] sm:$0xff]
        %v210 = vld [vmem:[#allocation2 + $0x88] sm:$0xff]
        %v211 = vld [vmem:[#allocation2 + $0x90] sm:$0xff]
        %v212 = vld [vmem:[#allocation2 + $0x98] sm:$0xff]
        %v213 = vld [vmem:[#allocation2 + $0xa0] sm:$0xff]
        %v214 = vld [vmem:[#allocation2 + $0xa8] sm:$0xff]
        %v215 = vld [vmem:[#allocation2 + $0xb0] sm:$0xff]
        %v216 = vld [vmem:[#allocation2 + $0xb8] sm:$0xff]
        %v217 = vld [vmem:[#allocation2 + $0xc0] sm:$0xff]
        %v218 = vld [vmem:[#allocation2 + $0xc8] sm:$0xff]
        %v219 = vld [vmem:[#allocation2 + $0xd0] sm:$0xff]
        %v220 = vld [vmem:[#allocation2 + $0xd8] sm:$0xff]
        %v221 = vld [vmem:[#allocation2 + $0xe0] sm:$0xff]
        %v222 = vld [vmem:[#allocation2 + $0xe8] sm:$0xff]
        %v223 = vld [vmem:[#allocation2 + $0xf0] sm:$0xff]
        %v224 = vld [vmem:[#allocation2 + $0xf8] sm:$0xff]
        %v225 = vld [vmem:[#allocation2 + $0x100] sm:$0xff]
        %v226 = vld [vmem:[#allocation2 + $0x108] sm:$0xff]
        %v227 = vld [vmem:[#allocation2 + $0x110] sm:$0xff]
        %v228 = vld [vmem:[#allocation2 + $0x118] sm:$0xff]
        %v229 = vld [vmem:[#allocation2 + $0x120] sm:$0xff]
        %v230 = vld [vmem:[#allocation2 + $0x128] sm:$0xff]
        %v231 = vld [vmem:[#allocation2 + $0x130] sm:$0xff]
        %v232 = vld [vmem:[#allocation2 + $0x138] sm:$0xff]
        %v233 = vld [vmem:[#allocation2 + $0x140] sm:$0xff]
        %v234 = vld [vmem:[#allocation2 + $0x148] sm:$0xff]
        %v235 = vld [vmem:[#allocation2 + $0x150] sm:$0xff]
        %v236 = vld [vmem:[#allocation2 + $0x158] sm:$0xff]
        %v237 = vld [vmem:[#allocation2 + $0x160] sm:$0xff]
        %v238 = vld [vmem:[#allocation2 + $0x168] sm:$0xff]
        %v239 = vld [vmem:[#allocation2 + $0x170] sm:$0xff]
        %v240 = vld [vmem:[#allocation2 + $0x178] sm:$0xff]
        %v241 = vld [vmem:[#allocation2 + $0x180] sm:$0xff]
        %v242 = vld [vmem:[#allocation2 + $0x188] sm:$0xff]
        %v243 = vld [vmem:[#allocation2 + $0x190] sm:$0xff]
        %v244 = vld [vmem:[#allocation2 + $0x198] sm:$0xff]
        %v245 = vld [vmem:[#allocation2 + $0x1a0] sm:$0xff]
        %v246 = vld [vmem:[#allocation2 + $0x1a8] sm:$0xff]
        %v247 = vld [vmem:[#allocation2 + $0x1b0] sm:$0xff]
        %v248 = vld [vmem:[#allocation2 + $0x1b8] sm:$0xff]
        %v249 = vld [vmem:[#allocation2 + $0x1c0] sm:$0xff]
        %v250 = vld [vmem:[#allocation2 + $0x1c8] sm:$0xff]
        %v251 = vld [vmem:[#allocation2 + $0x1d0] sm:$0xff]
        %v252 = vld [vmem:[#allocation2 + $0x1d8] sm:$0xff]
        %v253 = vld [vmem:[#allocation2 + $0x1e0] sm:$0xff]
        %v254 = vld [vmem:[#allocation2 + $0x1e8] sm:$0xff]
        %v255 = vld [vmem:[#allocation2 + $0x1f0] sm:$0xff]
        %v256 = vld [vmem:[#allocation2 + $0x1f8] sm:$0xff]
        %s257 = scalar_lea.vmem %s182, 2
        %v258 = vld [vmem:[%s257] sm:$0x3]
        %s259 = scalar_lea.vmem [#allocation2], 512
        %v260 = vld [vmem:[%s259] sm:$0xff]
        %v261 = vld [vmem:[%s259 + $0x8] sm:$0xff]
        %v262 = vld [vmem:[%s259 + $0x10] sm:$0xff]
        %v263 = vld [vmem:[%s259 + $0x18] sm:$0xff]
        %v264 = vld [vmem:[%s259 + $0x20] sm:$0xff]
        %v265 = vld [vmem:[%s259 + $0x28] sm:$0xff]
        %v266 = vld [vmem:[%s259 + $0x30] sm:$0xff]
        %v267 = vld [vmem:[%s259 + $0x38] sm:$0xff]
        %v268 = vld [vmem:[%s259 + $0x40] sm:$0xff]
        %v269 = vld [vmem:[%s259 + $0x48] sm:$0xff]
        %v270 = vld [vmem:[%s259 + $0x50] sm:$0xff]
        %v271 = vld [vmem:[%s259 + $0x58] sm:$0xff]
        %v272 = vld [vmem:[%s259 + $0x60] sm:$0xff]
        %v273 = vld [vmem:[%s259 + $0x68] sm:$0xff]
        %v274 = vld [vmem:[%s259 + $0x70] sm:$0xff]
        %v275 = vld [vmem:[%s259 + $0x78] sm:$0xff]
        %v276 = vld [vmem:[%s259 + $0x80] sm:$0xff]
        %v277 = vld [vmem:[%s259 + $0x88] sm:$0xff]
        %v278 = vld [vmem:[%s259 + $0x90] sm:$0xff]
        %v279 = vld [vmem:[%s259 + $0x98] sm:$0xff]
        %v280 = vld [vmem:[%s259 + $0xa0] sm:$0xff]
        %v281 = vld [vmem:[%s259 + $0xa8] sm:$0xff]
        %v282 = vld [vmem:[%s259 + $0xb0] sm:$0xff]
        %v283 = vld [vmem:[%s259 + $0xb8] sm:$0xff]
        %v284 = vld [vmem:[%s259 + $0xc0] sm:$0xff]
        %v285 = vld [vmem:[%s259 + $0xc8] sm:$0xff]
        %v286 = vld [vmem:[%s259 + $0xd0] sm:$0xff]
        %v287 = vld [vmem:[%s259 + $0xd8] sm:$0xff]
        %v288 = vld [vmem:[%s259 + $0xe0] sm:$0xff]
        %v289 = vld [vmem:[%s259 + $0xe8] sm:$0xff]
        %v290 = vld [vmem:[%s259 + $0xf0] sm:$0xff]
        %v291 = vld [vmem:[%s259 + $0xf8] sm:$0xff]
        %v292 = vld [vmem:[%s259 + $0x100] sm:$0xff]
        %v293 = vld [vmem:[%s259 + $0x108] sm:$0xff]
        %v294 = vld [vmem:[%s259 + $0x110] sm:$0xff]
        %v295 = vld [vmem:[%s259 + $0x118] sm:$0xff]
        %v296 = vld [vmem:[%s259 + $0x120] sm:$0xff]
        %v297 = vld [vmem:[%s259 + $0x128] sm:$0xff]
        %v298 = vld [vmem:[%s259 + $0x130] sm:$0xff]
        %v299 = vld [vmem:[%s259 + $0x138] sm:$0xff]
        %v300 = vld [vmem:[%s259 + $0x140] sm:$0xff]
        %v301 = vld [vmem:[%s259 + $0x148] sm:$0xff]
        %v302 = vld [vmem:[%s259 + $0x150] sm:$0xff]
        %v303 = vld [vmem:[%s259 + $0x158] sm:$0xff]
        %v304 = vld [vmem:[%s259 + $0x160] sm:$0xff]
        %v305 = vld [vmem:[%s259 + $0x168] sm:$0xff]
        %v306 = vld [vmem:[%s259 + $0x170] sm:$0xff]
        %v307 = vld [vmem:[%s259 + $0x178] sm:$0xff]
        %v308 = vld [vmem:[%s259 + $0x180] sm:$0xff]
        %v309 = vld [vmem:[%s259 + $0x188] sm:$0xff]
        %v310 = vld [vmem:[%s259 + $0x190] sm:$0xff]
        %v311 = vld [vmem:[%s259 + $0x198] sm:$0xff]
        %v312 = vld [vmem:[%s259 + $0x1a0] sm:$0xff]
        %v313 = vld [vmem:[%s259 + $0x1a8] sm:$0xff]
        %v314 = vld [vmem:[%s259 + $0x1b0] sm:$0xff]
        %v315 = vld [vmem:[%s259 + $0x1b8] sm:$0xff]
        %v316 = vld [vmem:[%s259 + $0x1c0] sm:$0xff]
        %v317 = vld [vmem:[%s259 + $0x1c8] sm:$0xff]
        %v318 = vld [vmem:[%s259 + $0x1d0] sm:$0xff]
        %v319 = vld [vmem:[%s259 + $0x1d8] sm:$0xff]
        %v320 = vld [vmem:[%s259 + $0x1e0] sm:$0xff]
        %v321 = vld [vmem:[%s259 + $0x1e8] sm:$0xff]
        %v322 = vld [vmem:[%s259 + $0x1f0] sm:$0xff]
        %v323 = vld [vmem:[%s259 + $0x1f8] sm:$0xff]
        %324 = vmatprep.subr.mxu0 %v261
        %325 = vmatpush1.msra.mxu0 %v260
        %326 = vmatprep.subr.mxu0 %v265
        %327 = vmatpush1.msra.mxu0 %v264
        %328 = vmatprep.subr.mxu0 %v269
        %329 = vmatpush1.msra.mxu0 %v268
        %330 = vmatprep.subr.mxu0 %v273
        %331 = vmatpush1.msra.mxu0 %v272
        %332 = vmatprep.subr.mxu0 %v277
        %333 = vmatpush1.msra.mxu0 %v276
        %334 = vmatprep.subr.mxu0 %v281
        %335 = vmatpush1.msra.mxu0 %v280
        %336 = vmatprep.subr.mxu0 %v285
        %337 = vmatpush1.msra.mxu0 %v284
        %338 = vmatprep.subr.mxu0 %v289
        %339 = vmatpush1.msra.mxu0 %v288
        %340 = vmatprep.subr.mxu0 %v293
        %341 = vmatpush1.msra.mxu0 %v292
        %342 = vmatprep.subr.mxu0 %v297
        %343 = vmatpush1.msra.mxu0 %v296
        %344 = vmatprep.subr.mxu0 %v301
        %345 = vmatpush1.msra.mxu0 %v300
        %346 = vmatprep.subr.mxu0 %v305
        %347 = vmatpush1.msra.mxu0 %v304
        %348 = vmatprep.subr.mxu0 %v309
        %349 = vmatpush1.msra.mxu0 %v308
        %350 = vmatprep.subr.mxu0 %v313
        %351 = vmatpush1.msra.mxu0 %v312
        %352 = vmatprep.subr.mxu0 %v317
        %353 = vmatpush1.msra.mxu0 %v316
        %354 = vmatprep.subr.mxu0 %v321
        %355 = vmatpush1.msra.mxu0 %v320
        %356 = vmatprep.subr.mxu0 0.0
        %357 = vmatpush1.msra.mxu0 0.0
        %358 = vmatprep.subr.mxu0 0.0
        %359 = vmatpush1.msra.mxu0 0.0
        %360 = vmatprep.subr.mxu0 0.0
        %361 = vmatpush1.msra.mxu0 0.0
        %362 = vmatprep.subr.mxu0 0.0
        %363 = vmatpush1.msra.mxu0 0.0
        %364 = vmatprep.subr.mxu0 0.0
        %365 = vmatpush1.msra.mxu0 0.0
        %366 = vmatprep.subr.mxu0 0.0
        %367 = vmatpush1.msra.mxu0 0.0
        %368 = vmatprep.subr.mxu0 0.0
        %369 = vmatpush1.msra.mxu0 0.0
        %370 = vmatprep.subr.mxu0 0.0
        %371 = vmatpush1.msra.mxu0 0.0
        %372 = vmatprep.subr.mxu0 0.0
        %373 = vmatpush1.msra.mxu0 0.0
        %374 = vmatprep.subr.mxu0 0.0
        %375 = vmatpush1.msra.mxu0 0.0
        %376 = vmatprep.subr.mxu0 0.0
        %377 = vmatpush1.msra.mxu0 0.0
        %378 = vmatprep.subr.mxu0 0.0
        %379 = vmatpush1.msra.mxu0 0.0
        %380 = vmatprep.subr.mxu0 0.0
        %381 = vmatpush1.msra.mxu0 0.0
        %382 = vmatprep.subr.mxu0 0.0
        %383 = vmatpush1.msra.mxu0 0.0
        %384 = vmatprep.subr.mxu0 0.0
        %385 = vmatpush1.msra.mxu0 0.0
        %386 = vmatprep.subr.mxu0 0.0
        %387 = vmatpush1.msra.mxu0 0.0
        %388 = vmatprep.mubr.f32.mxu0 0.0
        %389 = vmatmul.mubr.f32.gmra.mrb[0].mxu0 %v258
        %v390 = vpop.f32.mrb[0].mxu0
        %v391 = vadd.f32 0.0, %v390
        %v392 = vpop.f32.mrb[0].mxu0
        %v393 = vadd.f32 0.0, %v392
        %394 = vdwg.mxu0
        %395 = vmatprep.subr.mxu0 %v263
        %396 = vmatpush1.msra.mxu0 %v262
        %397 = vmatprep.subr.mxu0 %v267
        %398 = vmatpush1.msra.mxu0 %v266
        %399 = vmatprep.subr.mxu0 %v271
        %400 = vmatpush1.msra.mxu0 %v270
        %401 = vmatprep.subr.mxu0 %v275
        %402 = vmatpush1.msra.mxu0 %v274
        %403 = vmatprep.subr.mxu0 %v279
        %404 = vmatpush1.msra.mxu0 %v278
        %405 = vmatprep.subr.mxu0 %v283
        %406 = vmatpush1.msra.mxu0 %v282
        %407 = vmatprep.subr.mxu0 %v287
        %408 = vmatpush1.msra.mxu0 %v286
        %409 = vmatprep.subr.mxu0 %v291
        %410 = vmatpush1.msra.mxu0 %v290
        %411 = vmatprep.subr.mxu0 %v295
        %412 = vmatpush1.msra.mxu0 %v294
        %413 = vmatprep.subr.mxu0 %v299
        %414 = vmatpush1.msra.mxu0 %v298
        %415 = vmatprep.subr.mxu0 %v303
        %416 = vmatpush1.msra.mxu0 %v302
        %417 = vmatprep.subr.mxu0 %v307
        %418 = vmatpush1.msra.mxu0 %v306
        %419 = vmatprep.subr.mxu0 %v311
        %420 = vmatpush1.msra.mxu0 %v310
        %421 = vmatprep.subr.mxu0 %v315
        %422 = vmatpush1.msra.mxu0 %v314
        %423 = vmatprep.subr.mxu0 %v319
        %424 = vmatpush1.msra.mxu0 %v318
        %425 = vmatprep.subr.mxu0 %v323
        %426 = vmatpush1.msra.mxu0 %v322
        %427 = vmatprep.subr.mxu0 0.0
        %428 = vmatpush1.msra.mxu0 0.0
        %429 = vmatprep.subr.mxu0 0.0
        %430 = vmatpush1.msra.mxu0 0.0
        %431 = vmatprep.subr.mxu0 0.0
        %432 = vmatpush1.msra.mxu0 0.0
        %433 = vmatprep.subr.mxu0 0.0
        %434 = vmatpush1.msra.mxu0 0.0
        %435 = vmatprep.subr.mxu0 0.0
        %436 = vmatpush1.msra.mxu0 0.0
        %437 = vmatprep.subr.mxu0 0.0
        %438 = vmatpush1.msra.mxu0 0.0
        %439 = vmatprep.subr.mxu0 0.0
        %440 = vmatpush1.msra.mxu0 0.0
        %441 = vmatprep.subr.mxu0 0.0
        %442 = vmatpush1.msra.mxu0 0.0
        %443 = vmatprep.subr.mxu0 0.0
        %444 = vmatpush1.msra.mxu0 0.0
        %445 = vmatprep.subr.mxu0 0.0
        %446 = vmatpush1.msra.mxu0 0.0
        %447 = vmatprep.subr.mxu0 0.0
        %448 = vmatpush1.msra.mxu0 0.0
        %449 = vmatprep.subr.mxu0 0.0
        %450 = vmatpush1.msra.mxu0 0.0
        %451 = vmatprep.subr.mxu0 0.0
        %452 = vmatpush1.msra.mxu0 0.0
        %453 = vmatprep.subr.mxu0 0.0
        %454 = vmatpush1.msra.mxu0 0.0
        %455 = vmatprep.subr.mxu0 0.0
        %456 = vmatpush1.msra.mxu0 0.0
        %457 = vmatprep.subr.mxu0 0.0
        %458 = vmatpush1.msra.mxu0 0.0
        %459 = vmatprep.mubr.f32.mxu0 0.0
        %460 = vmatmul.mubr.f32.gmra.mrb[0].mxu0 %v258
        %v461 = vpop.f32.mrb[0].mxu0
        %v462 = vadd.f32 0.0, %v461
        %v463 = vpop.f32.mrb[0].mxu0
        %v464 = vadd.f32 0.0, %v463
        %465 = vdwg.mxu0
        %466 = vmatprep.subr.mxu0 %v194
        %467 = vmatpush1.msra.mxu0 %v193
        %468 = vmatprep.subr.mxu0 %v198
        %469 = vmatpush1.msra.mxu0 %v197
        %470 = vmatprep.subr.mxu0 %v202
        %471 = vmatpush1.msra.mxu0 %v201
        %472 = vmatprep.subr.mxu0 %v206
        %473 = vmatpush1.msra.mxu0 %v205
        %474 = vmatprep.subr.mxu0 %v210
        %475 = vmatpush1.msra.mxu0 %v209
        %476 = vmatprep.subr.mxu0 %v214
        %477 = vmatpush1.msra.mxu0 %v213
        %478 = vmatprep.subr.mxu0 %v218
        %479 = vmatpush1.msra.mxu0 %v217
        %480 = vmatprep.subr.mxu0 %v222
        %481 = vmatpush1.msra.mxu0 %v221
        %482 = vmatprep.subr.mxu0 %v226
        %483 = vmatpush1.msra.mxu0 %v225
        %484 = vmatprep.subr.mxu0 %v230
        %485 = vmatpush1.msra.mxu0 %v229
        %486 = vmatprep.subr.mxu0 %v234
        %487 = vmatpush1.msra.mxu0 %v233
        %488 = vmatprep.subr.mxu0 %v238
        %489 = vmatpush1.msra.mxu0 %v237
        %490 = vmatprep.subr.mxu0 %v242
        %491 = vmatpush1.msra.mxu0 %v241
        %492 = vmatprep.subr.mxu0 %v246
        %493 = vmatpush1.msra.mxu0 %v245
        %494 = vmatprep.subr.mxu0 %v250
        %495 = vmatpush1.msra.mxu0 %v249
        %496 = vmatprep.subr.mxu0 %v254
        %497 = vmatpush1.msra.mxu0 %v253
        %498 = vmatprep.subr.mxu0 0.0
        %499 = vmatpush1.msra.mxu0 0.0
        %500 = vmatprep.subr.mxu0 0.0
        %501 = vmatpush1.msra.mxu0 0.0
        %502 = vmatprep.subr.mxu0 0.0
        %503 = vmatpush1.msra.mxu0 0.0
        %504 = vmatprep.subr.mxu0 0.0
        %505 = vmatpush1.msra.mxu0 0.0
        %506 = vmatprep.subr.mxu0 0.0
        %507 = vmatpush1.msra.mxu0 0.0
        %508 = vmatprep.subr.mxu0 0.0
        %509 = vmatpush1.msra.mxu0 0.0
        %510 = vmatprep.subr.mxu0 0.0
        %511 = vmatpush1.msra.mxu0 0.0
        %512 = vmatprep.subr.mxu0 0.0
        %513 = vmatpush1.msra.mxu0 0.0
        %514 = vmatprep.subr.mxu0 0.0
        %515 = vmatpush1.msra.mxu0 0.0
        %516 = vmatprep.subr.mxu0 0.0
        %517 = vmatpush1.msra.mxu0 0.0
        %518 = vmatprep.subr.mxu0 0.0
        %519 = vmatpush1.msra.mxu0 0.0
        %520 = vmatprep.subr.mxu0 0.0
        %521 = vmatpush1.msra.mxu0 0.0
        %522 = vmatprep.subr.mxu0 0.0
        %523 = vmatpush1.msra.mxu0 0.0
        %524 = vmatprep.subr.mxu0 0.0
        %525 = vmatpush1.msra.mxu0 0.0
        %526 = vmatprep.subr.mxu0 0.0
        %527 = vmatpush1.msra.mxu0 0.0
        %528 = vmatprep.subr.mxu0 0.0
        %529 = vmatpush1.msra.mxu0 0.0
        %530 = vmatprep.mubr.f32.mxu0 0.0
        %531 = vmatmul.mubr.f32.gmra.mrb[0].mxu0 %v192
        %v532 = vpop.f32.mrb[0].mxu0
        %v533 = vadd.f32 %v391, %v532
        %v534 = vpop.f32.mrb[0].mxu0
        %v535 = vadd.f32 %v393, %v534
        %536 = vdwg.mxu0
        %537 = vmatprep.subr.mxu0 %v196
        %538 = vmatpush1.msra.mxu0 %v195
        %539 = vmatprep.subr.mxu0 %v200
        %540 = vmatpush1.msra.mxu0 %v199
        %541 = vmatprep.subr.mxu0 %v204
        %542 = vmatpush1.msra.mxu0 %v203
        %543 = vmatprep.subr.mxu0 %v208
        %544 = vmatpush1.msra.mxu0 %v207
        %545 = vmatprep.subr.mxu0 %v212
        %546 = vmatpush1.msra.mxu0 %v211
        %547 = vmatprep.subr.mxu0 %v216
        %548 = vmatpush1.msra.mxu0 %v215
        %549 = vmatprep.subr.mxu0 %v220
        %550 = vmatpush1.msra.mxu0 %v219
        %551 = vmatprep.subr.mxu0 %v224
        %552 = vmatpush1.msra.mxu0 %v223
        %553 = vmatprep.subr.mxu0 %v228
        %554 = vmatpush1.msra.mxu0 %v227
        %555 = vmatprep.subr.mxu0 %v232
        %556 = vmatpush1.msra.mxu0 %v231
        %557 = vmatprep.subr.mxu0 %v236
        %558 = vmatpush1.msra.mxu0 %v235
        %559 = vmatprep.subr.mxu0 %v240
        %560 = vmatpush1.msra.mxu0 %v239
        %561 = vmatprep.subr.mxu0 %v244
        %562 = vmatpush1.msra.mxu0 %v243
        %563 = vmatprep.subr.mxu0 %v248
        %564 = vmatpush1.msra.mxu0 %v247
        %565 = vmatprep.subr.mxu0 %v252
        %566 = vmatpush1.msra.mxu0 %v251
        %567 = vmatprep.subr.mxu0 %v256
        %568 = vmatpush1.msra.mxu0 %v255
        %569 = vmatprep.subr.mxu0 0.0
        %570 = vmatpush1.msra.mxu0 0.0
        %571 = vmatprep.subr.mxu0 0.0
        %572 = vmatpush1.msra.mxu0 0.0
        %573 = vmatprep.subr.mxu0 0.0
        %574 = vmatpush1.msra.mxu0 0.0
        %575 = vmatprep.subr.mxu0 0.0
        %576 = vmatpush1.msra.mxu0 0.0
        %577 = vmatprep.subr.mxu0 0.0
        %578 = vmatpush1.msra.mxu0 0.0
        %579 = vmatprep.subr.mxu0 0.0
        %580 = vmatpush1.msra.mxu0 0.0
        %581 = vmatprep.subr.mxu0 0.0
        %582 = vmatpush1.msra.mxu0 0.0
        %583 = vmatprep.subr.mxu0 0.0
        %584 = vmatpush1.msra.mxu0 0.0
        %585 = vmatprep.subr.mxu0 0.0
        %586 = vmatpush1.msra.mxu0 0.0
        %587 = vmatprep.subr.mxu0 0.0
        %588 = vmatpush1.msra.mxu0 0.0
        %589 = vmatprep.subr.mxu0 0.0
        %590 = vmatpush1.msra.mxu0 0.0
        %591 = vmatprep.subr.mxu0 0.0
        %592 = vmatpush1.msra.mxu0 0.0
        %593 = vmatprep.subr.mxu0 0.0
        %594 = vmatpush1.msra.mxu0 0.0
        %595 = vmatprep.subr.mxu0 0.0
        %596 = vmatpush1.msra.mxu0 0.0
        %597 = vmatprep.subr.mxu0 0.0
        %598 = vmatpush1.msra.mxu0 0.0
        %599 = vmatprep.subr.mxu0 0.0
        %600 = vmatpush1.msra.mxu0 0.0
        %601 = vmatprep.mubr.f32.mxu0 0.0
        %602 = vmatmul.mubr.f32.gmra.mrb[0].mxu0 %v192
        %v603 = vpop.f32.mrb[0].mxu0
        %v604 = vadd.f32 %v462, %v603
        %v605 = vpop.f32.mrb[0].mxu0
        %v606 = vadd.f32 %v464, %v605
        %607 = vdwg.mxu0
        %s608 = scalar_lea.vmem %s182, 4
        %v609 = vld [vmem:[%s608] sm:$0x3]
        %s610 = scalar_lea.vmem [#allocation2], 1024
        %v611 = vld [vmem:[%s610] sm:$0xff]
        %v612 = vld [vmem:[%s610 + $0x8] sm:$0xff]
        %v613 = vld [vmem:[%s610 + $0x10] sm:$0xff]
        %v614 = vld [vmem:[%s610 + $0x18] sm:$0xff]
        %v615 = vld [vmem:[%s610 + $0x20] sm:$0xff]
        %v616 = vld [vmem:[%s610 + $0x28] sm:$0xff]
        %v617 = vld [vmem:[%s610 + $0x30] sm:$0xff]
        %v618 = vld [vmem:[%s610 + $0x38] sm:$0xff]
        %v619 = vld [vmem:[%s610 + $0x40] sm:$0xff]
        %v620 = vld [vmem:[%s610 + $0x48] sm:$0xff]
        %v621 = vld [vmem:[%s610 + $0x50] sm:$0xff]
        %v622 = vld [vmem:[%s610 + $0x58] sm:$0xff]
        %v623 = vld [vmem:[%s610 + $0x60] sm:$0xff]
        %v624 = vld [vmem:[%s610 + $0x68] sm:$0xff]
        %v625 = vld [vmem:[%s610 + $0x70] sm:$0xff]
        %v626 = vld [vmem:[%s610 + $0x78] sm:$0xff]
        %v627 = vld [vmem:[%s610 + $0x80] sm:$0xff]
        %v628 = vld [vmem:[%s610 + $0x88] sm:$0xff]
        %v629 = vld [vmem:[%s610 + $0x90] sm:$0xff]
        %v630 = vld [vmem:[%s610 + $0x98] sm:$0xff]
        %v631 = vld [vmem:[%s610 + $0xa0] sm:$0xff]
        %v632 = vld [vmem:[%s610 + $0xa8] sm:$0xff]
        %v633 = vld [vmem:[%s610 + $0xb0] sm:$0xff]
        %v634 = vld [vmem:[%s610 + $0xb8] sm:$0xff]
        %v635 = vld [vmem:[%s610 + $0xc0] sm:$0xff]
        %v636 = vld [vmem:[%s610 + $0xc8] sm:$0xff]
        %v637 = vld [vmem:[%s610 + $0xd0] sm:$0xff]
        %v638 = vld [vmem:[%s610 + $0xd8] sm:$0xff]
        %v639 = vld [vmem:[%s610 + $0xe0] sm:$0xff]
        %v640 = vld [vmem:[%s610 + $0xe8] sm:$0xff]
        %v641 = vld [vmem:[%s610 + $0xf0] sm:$0xff]
        %v642 = vld [vmem:[%s610 + $0xf8] sm:$0xff]
        %v643 = vld [vmem:[%s610 + $0x100] sm:$0xff]
        %v644 = vld [vmem:[%s610 + $0x108] sm:$0xff]
        %v645 = vld [vmem:[%s610 + $0x110] sm:$0xff]
        %v646 = vld [vmem:[%s610 + $0x118] sm:$0xff]
        %v647 = vld [vmem:[%s610 + $0x120] sm:$0xff]
        %v648 = vld [vmem:[%s610 + $0x128] sm:$0xff]
        %v649 = vld [vmem:[%s610 + $0x130] sm:$0xff]
        %v650 = vld [vmem:[%s610 + $0x138] sm:$0xff]
        %v651 = vld [vmem:[%s610 + $0x140] sm:$0xff]
        %v652 = vld [vmem:[%s610 + $0x148] sm:$0xff]
        %v653 = vld [vmem:[%s610 + $0x150] sm:$0xff]
        %v654 = vld [vmem:[%s610 + $0x158] sm:$0xff]
        %v655 = vld [vmem:[%s610 + $0x160] sm:$0xff]
        %v656 = vld [vmem:[%s610 + $0x168] sm:$0xff]
        %v657 = vld [vmem:[%s610 + $0x170] sm:$0xff]
        %v658 = vld [vmem:[%s610 + $0x178] sm:$0xff]
        %v659 = vld [vmem:[%s610 + $0x180] sm:$0xff]
        %v660 = vld [vmem:[%s610 + $0x188] sm:$0xff]
        %v661 = vld [vmem:[%s610 + $0x190] sm:$0xff]
        %v662 = vld [vmem:[%s610 + $0x198] sm:$0xff]
        %v663 = vld [vmem:[%s610 + $0x1a0] sm:$0xff]
        %v664 = vld [vmem:[%s610 + $0x1a8] sm:$0xff]
        %v665 = vld [vmem:[%s610 + $0x1b0] sm:$0xff]
        %v666 = vld [vmem:[%s610 + $0x1b8] sm:$0xff]
        %v667 = vld [vmem:[%s610 + $0x1c0] sm:$0xff]
        %v668 = vld [vmem:[%s610 + $0x1c8] sm:$0xff]
        %v669 = vld [vmem:[%s610 + $0x1d0] sm:$0xff]
        %v670 = vld [vmem:[%s610 + $0x1d8] sm:$0xff]
        %v671 = vld [vmem:[%s610 + $0x1e0] sm:$0xff]
        %v672 = vld [vmem:[%s610 + $0x1e8] sm:$0xff]
        %v673 = vld [vmem:[%s610 + $0x1f0] sm:$0xff]
        %v674 = vld [vmem:[%s610 + $0x1f8] sm:$0xff]
        %675 = vmatprep.subr.mxu0 %v612
        %676 = vmatpush1.msra.mxu0 %v611
        %677 = vmatprep.subr.mxu0 %v616
        %678 = vmatpush1.msra.mxu0 %v615
        %679 = vmatprep.subr.mxu0 %v620
        %680 = vmatpush1.msra.mxu0 %v619
        %681 = vmatprep.subr.mxu0 %v624
        %682 = vmatpush1.msra.mxu0 %v623
        %683 = vmatprep.subr.mxu0 %v628
        %684 = vmatpush1.msra.mxu0 %v627
        %685 = vmatprep.subr.mxu0 %v632
        %686 = vmatpush1.msra.mxu0 %v631
        %687 = vmatprep.subr.mxu0 %v636
        %688 = vmatpush1.msra.mxu0 %v635
        %689 = vmatprep.subr.mxu0 %v640
        %690 = vmatpush1.msra.mxu0 %v639
        %691 = vmatprep.subr.mxu0 %v644
        %692 = vmatpush1.msra.mxu0 %v643
        %693 = vmatprep.subr.mxu0 %v648
        %694 = vmatpush1.msra.mxu0 %v647
        %695 = vmatprep.subr.mxu0 %v652
        %696 = vmatpush1.msra.mxu0 %v651
        %697 = vmatprep.subr.mxu0 %v656
        %698 = vmatpush1.msra.mxu0 %v655
        %699 = vmatprep.subr.mxu0 %v660
        %700 = vmatpush1.msra.mxu0 %v659
        %701 = vmatprep.subr.mxu0 %v664
        %702 = vmatpush1.msra.mxu0 %v663
        %703 = vmatprep.subr.mxu0 %v668
        %704 = vmatpush1.msra.mxu0 %v667
        %705 = vmatprep.subr.mxu0 %v672
        %706 = vmatpush1.msra.mxu0 %v671
        %707 = vmatprep.subr.mxu0 0.0
        %708 = vmatpush1.msra.mxu0 0.0
        %709 = vmatprep.subr.mxu0 0.0
        %710 = vmatpush1.msra.mxu0 0.0
        %711 = vmatprep.subr.mxu0 0.0
        %712 = vmatpush1.msra.mxu0 0.0
        %713 = vmatprep.subr.mxu0 0.0
        %714 = vmatpush1.msra.mxu0 0.0
        %715 = vmatprep.subr.mxu0 0.0
        %716 = vmatpush1.msra.mxu0 0.0
        %717 = vmatprep.subr.mxu0 0.0
        %718 = vmatpush1.msra.mxu0 0.0
        %719 = vmatprep.subr.mxu0 0.0
        %720 = vmatpush1.msra.mxu0 0.0
        %721 = vmatprep.subr.mxu0 0.0
        %722 = vmatpush1.msra.mxu0 0.0
        %723 = vmatprep.subr.mxu0 0.0
        %724 = vmatpush1.msra.mxu0 0.0
        %725 = vmatprep.subr.mxu0 0.0
        %726 = vmatpush1.msra.mxu0 0.0
        %727 = vmatprep.subr.mxu0 0.0
        %728 = vmatpush1.msra.mxu0 0.0
        %729 = vmatprep.subr.mxu0 0.0
        %730 = vmatpush1.msra.mxu0 0.0
        %731 = vmatprep.subr.mxu0 0.0
        %732 = vmatpush1.msra.mxu0 0.0
        %733 = vmatprep.subr.mxu0 0.0
        %734 = vmatpush1.msra.mxu0 0.0
        %735 = vmatprep.subr.mxu0 0.0
        %736 = vmatpush1.msra.mxu0 0.0
        %737 = vmatprep.subr.mxu0 0.0
        %738 = vmatpush1.msra.mxu0 0.0
        %739 = vmatprep.mubr.f32.mxu0 0.0
        %740 = vmatmul.mubr.f32.gmra.mrb[0].mxu0 %v609
        %v741 = vpop.f32.mrb[0].mxu0
        %v742 = vadd.f32 0.0, %v741
        %v743 = vpop.f32.mrb[0].mxu0
        %v744 = vadd.f32 0.0, %v743
        %745 = vdwg.mxu0
        %746 = vmatprep.subr.mxu0 %v614
        %747 = vmatpush1.msra.mxu0 %v613
        %748 = vmatprep.subr.mxu0 %v618
        %749 = vmatpush1.msra.mxu0 %v617
        %750 = vmatprep.subr.mxu0 %v622
        %751 = vmatpush1.msra.mxu0 %v621
        %752 = vmatprep.subr.mxu0 %v626
        %753 = vmatpush1.msra.mxu0 %v625
        %754 = vmatprep.subr.mxu0 %v630
        %755 = vmatpush1.msra.mxu0 %v629
        %756 = vmatprep.subr.mxu0 %v634
        %757 = vmatpush1.msra.mxu0 %v633
        %758 = vmatprep.subr.mxu0 %v638
        %759 = vmatpush1.msra.mxu0 %v637
        %760 = vmatprep.subr.mxu0 %v642
        %761 = vmatpush1.msra.mxu0 %v641
        %762 = vmatprep.subr.mxu0 %v646
        %763 = vmatpush1.msra.mxu0 %v645
        %764 = vmatprep.subr.mxu0 %v650
        %765 = vmatpush1.msra.mxu0 %v649
        %766 = vmatprep.subr.mxu0 %v654
        %767 = vmatpush1.msra.mxu0 %v653
        %768 = vmatprep.subr.mxu0 %v658
        %769 = vmatpush1.msra.mxu0 %v657
        %770 = vmatprep.subr.mxu0 %v662
        %771 = vmatpush1.msra.mxu0 %v661
        %772 = vmatprep.subr.mxu0 %v666
        %773 = vmatpush1.msra.mxu0 %v665
        %774 = vmatprep.subr.mxu0 %v670
        %775 = vmatpush1.msra.mxu0 %v669
        %776 = vmatprep.subr.mxu0 %v674
        %777 = vmatpush1.msra.mxu0 %v673
        %778 = vmatprep.subr.mxu0 0.0
        %779 = vmatpush1.msra.mxu0 0.0
        %780 = vmatprep.subr.mxu0 0.0
        %781 = vmatpush1.msra.mxu0 0.0
        %782 = vmatprep.subr.mxu0 0.0
        %783 = vmatpush1.msra.mxu0 0.0
        %784 = vmatprep.subr.mxu0 0.0
        %785 = vmatpush1.msra.mxu0 0.0
        %786 = vmatprep.subr.mxu0 0.0
        %787 = vmatpush1.msra.mxu0 0.0
        %788 = vmatprep.subr.mxu0 0.0
        %789 = vmatpush1.msra.mxu0 0.0
        %790 = vmatprep.subr.mxu0 0.0
        %791 = vmatpush1.msra.mxu0 0.0
        %792 = vmatprep.subr.mxu0 0.0
        %793 = vmatpush1.msra.mxu0 0.0
        %794 = vmatprep.subr.mxu0 0.0
        %795 = vmatpush1.msra.mxu0 0.0
        %796 = vmatprep.subr.mxu0 0.0
        %797 = vmatpush1.msra.mxu0 0.0
        %798 = vmatprep.subr.mxu0 0.0
        %799 = vmatpush1.msra.mxu0 0.0
        %800 = vmatprep.subr.mxu0 0.0
        %801 = vmatpush1.msra.mxu0 0.0
        %802 = vmatprep.subr.mxu0 0.0
        %803 = vmatpush1.msra.mxu0 0.0
        %804 = vmatprep.subr.mxu0 0.0
        %805 = vmatpush1.msra.mxu0 0.0
        %806 = vmatprep.subr.mxu0 0.0
        %807 = vmatpush1.msra.mxu0 0.0
        %808 = vmatprep.subr.mxu0 0.0
        %809 = vmatpush1.msra.mxu0 0.0
        %810 = vmatprep.mubr.f32.mxu0 0.0
        %811 = vmatmul.mubr.f32.gmra.mrb[0].mxu0 %v609
        %v812 = vpop.f32.mrb[0].mxu0
        %v813 = vadd.f32 0.0, %v812
        %v814 = vpop.f32.mrb[0].mxu0
        %v815 = vadd.f32 0.0, %v814
        %816 = vdwg.mxu0
        %v817 = vadd.f32 %v533, %v742
        %v818 = vadd.f32 %v535, %v744
        %v819 = vadd.f32 %v604, %v813
        %v820 = vadd.f32 %v606, %v815
        %s821 = scalar_lea.vmem %s182, 6
        %v822 = vld [vmem:[%s821] sm:$0x3]
        %s823 = scalar_lea.vmem [#allocation2], 1536
        %v824 = vld [vmem:[%s823] sm:$0xff]
        %v825 = vld [vmem:[%s823 + $0x8] sm:$0xff]
        %v826 = vld [vmem:[%s823 + $0x10] sm:$0xff]
        %v827 = vld [vmem:[%s823 + $0x18] sm:$0xff]
        %v828 = vld [vmem:[%s823 + $0x20] sm:$0xff]
        %v829 = vld [vmem:[%s823 + $0x28] sm:$0xff]
        %v830 = vld [vmem:[%s823 + $0x30] sm:$0xff]
        %v831 = vld [vmem:[%s823 + $0x38] sm:$0xff]
        %v832 = vld [vmem:[%s823 + $0x40] sm:$0xff]
        %v833 = vld [vmem:[%s823 + $0x48] sm:$0xff]
        %v834 = vld [vmem:[%s823 + $0x50] sm:$0xff]
        %v835 = vld [vmem:[%s823 + $0x58] sm:$0xff]
        %v836 = vld [vmem:[%s823 + $0x60] sm:$0xff]
        %v837 = vld [vmem:[%s823 + $0x68] sm:$0xff]
        %v838 = vld [vmem:[%s823 + $0x70] sm:$0xff]
        %v839 = vld [vmem:[%s823 + $0x78] sm:$0xff]
        %v840 = vld [vmem:[%s823 + $0x80] sm:$0xff]
        %v841 = vld [vmem:[%s823 + $0x88] sm:$0xff]
        %v842 = vld [vmem:[%s823 + $0x90] sm:$0xff]
        %v843 = vld [vmem:[%s823 + $0x98] sm:$0xff]
        %v844 = vld [vmem:[%s823 + $0xa0] sm:$0xff]
        %v845 = vld [vmem:[%s823 + $0xa8] sm:$0xff]
        %v846 = vld [vmem:[%s823 + $0xb0] sm:$0xff]
        %v847 = vld [vmem:[%s823 + $0xb8] sm:$0xff]
        %v848 = vld [vmem:[%s823 + $0xc0] sm:$0xff]
        %v849 = vld [vmem:[%s823 + $0xc8] sm:$0xff]
        %v850 = vld [vmem:[%s823 + $0xd0] sm:$0xff]
        %v851 = vld [vmem:[%s823 + $0xd8] sm:$0xff]
        %v852 = vld [vmem:[%s823 + $0xe0] sm:$0xff]
        %v853 = vld [vmem:[%s823 + $0xe8] sm:$0xff]
        %v854 = vld [vmem:[%s823 + $0xf0] sm:$0xff]
        %v855 = vld [vmem:[%s823 + $0xf8] sm:$0xff]
        %v856 = vld [vmem:[%s823 + $0x100] sm:$0xff]
        %v857 = vld [vmem:[%s823 + $0x108] sm:$0xff]
        %v858 = vld [vmem:[%s823 + $0x110] sm:$0xff]
        %v859 = vld [vmem:[%s823 + $0x118] sm:$0xff]
        %v860 = vld [vmem:[%s823 + $0x120] sm:$0xff]
        %v861 = vld [vmem:[%s823 + $0x128] sm:$0xff]
        %v862 = vld [vmem:[%s823 + $0x130] sm:$0xff]
        %v863 = vld [vmem:[%s823 + $0x138] sm:$0xff]
        %v864 = vld [vmem:[%s823 + $0x140] sm:$0xff]
        %v865 = vld [vmem:[%s823 + $0x148] sm:$0xff]
        %v866 = vld [vmem:[%s823 + $0x150] sm:$0xff]
        %v867 = vld [vmem:[%s823 + $0x158] sm:$0xff]
        %v868 = vld [vmem:[%s823 + $0x160] sm:$0xff]
        %v869 = vld [vmem:[%s823 + $0x168] sm:$0xff]
        %v870 = vld [vmem:[%s823 + $0x170] sm:$0xff]
        %v871 = vld [vmem:[%s823 + $0x178] sm:$0xff]
        %v872 = vld [vmem:[%s823 + $0x180] sm:$0xff]
        %v873 = vld [vmem:[%s823 + $0x188] sm:$0xff]
        %v874 = vld [vmem:[%s823 + $0x190] sm:$0xff]
        %v875 = vld [vmem:[%s823 + $0x198] sm:$0xff]
        %v876 = vld [vmem:[%s823 + $0x1a0] sm:$0xff]
        %v877 = vld [vmem:[%s823 + $0x1a8] sm:$0xff]
        %v878 = vld [vmem:[%s823 + $0x1b0] sm:$0xff]
        %v879 = vld [vmem:[%s823 + $0x1b8] sm:$0xff]
        %v880 = vld [vmem:[%s823 + $0x1c0] sm:$0xff]
        %v881 = vld [vmem:[%s823 + $0x1c8] sm:$0xff]
        %v882 = vld [vmem:[%s823 + $0x1d0] sm:$0xff]
        %v883 = vld [vmem:[%s823 + $0x1d8] sm:$0xff]
        %v884 = vld [vmem:[%s823 + $0x1e0] sm:$0xff]
        %v885 = vld [vmem:[%s823 + $0x1e8] sm:$0xff]
        %v886 = vld [vmem:[%s823 + $0x1f0] sm:$0xff]
        %v887 = vld [vmem:[%s823 + $0x1f8] sm:$0xff]
        %888 = vmatprep.subr.mxu0 %v825
        %889 = vmatpush1.msra.mxu0 %v824
        %890 = vmatprep.subr.mxu0 %v829
        %891 = vmatpush1.msra.mxu0 %v828
        %892 = vmatprep.subr.mxu0 %v833
        %893 = vmatpush1.msra.mxu0 %v832
        %894 = vmatprep.subr.mxu0 %v837
        %895 = vmatpush1.msra.mxu0 %v836
        %896 = vmatprep.subr.mxu0 %v841
        %897 = vmatpush1.msra.mxu0 %v840
        %898 = vmatprep.subr.mxu0 %v845
        %899 = vmatpush1.msra.mxu0 %v844
        %900 = vmatprep.subr.mxu0 %v849
        %901 = vmatpush1.msra.mxu0 %v848
        %902 = vmatprep.subr.mxu0 %v853
        %903 = vmatpush1.msra.mxu0 %v852
        %904 = vmatprep.subr.mxu0 %v857
        %905 = vmatpush1.msra.mxu0 %v856
        %906 = vmatprep.subr.mxu0 %v861
        %907 = vmatpush1.msra.mxu0 %v860
        %908 = vmatprep.subr.mxu0 %v865
        %909 = vmatpush1.msra.mxu0 %v864
        %910 = vmatprep.subr.mxu0 %v869
        %911 = vmatpush1.msra.mxu0 %v868
        %912 = vmatprep.subr.mxu0 %v873
        %913 = vmatpush1.msra.mxu0 %v872
        %914 = vmatprep.subr.mxu0 %v877
        %915 = vmatpush1.msra.mxu0 %v876
        %916 = vmatprep.subr.mxu0 %v881
        %917 = vmatpush1.msra.mxu0 %v880
        %918 = vmatprep.subr.mxu0 %v885
        %919 = vmatpush1.msra.mxu0 %v884
        %920 = vmatprep.subr.mxu0 0.0
        %921 = vmatpush1.msra.mxu0 0.0
        %922 = vmatprep.subr.mxu0 0.0
        %923 = vmatpush1.msra.mxu0 0.0
        %924 = vmatprep.subr.mxu0 0.0
        %925 = vmatpush1.msra.mxu0 0.0
        %926 = vmatprep.subr.mxu0 0.0
        %927 = vmatpush1.msra.mxu0 0.0
        %928 = vmatprep.subr.mxu0 0.0
        %929 = vmatpush1.msra.mxu0 0.0
        %930 = vmatprep.subr.mxu0 0.0
        %931 = vmatpush1.msra.mxu0 0.0
        %932 = vmatprep.subr.mxu0 0.0
        %933 = vmatpush1.msra.mxu0 0.0
        %934 = vmatprep.subr.mxu0 0.0
        %935 = vmatpush1.msra.mxu0 0.0
        %936 = vmatprep.subr.mxu0 0.0
        %937 = vmatpush1.msra.mxu0 0.0
        %938 = vmatprep.subr.mxu0 0.0
        %939 = vmatpush1.msra.mxu0 0.0
        %940 = vmatprep.subr.mxu0 0.0
        %941 = vmatpush1.msra.mxu0 0.0
        %942 = vmatprep.subr.mxu0 0.0
        %943 = vmatpush1.msra.mxu0 0.0
        %944 = vmatprep.subr.mxu0 0.0
        %945 = vmatpush1.msra.mxu0 0.0
        %946 = vmatprep.subr.mxu0 0.0
        %947 = vmatpush1.msra.mxu0 0.0
        %948 = vmatprep.subr.mxu0 0.0
        %949 = vmatpush1.msra.mxu0 0.0
        %950 = vmatprep.subr.mxu0 0.0
        %951 = vmatpush1.msra.mxu0 0.0
        %952 = vmatprep.mubr.f32.mxu0 0.0
        %953 = vmatmul.mubr.f32.gmra.mrb[0].mxu0 %v822
        %v954 = vpop.f32.mrb[0].mxu0
        %v955 = vadd.f32 0.0, %v954
        %v956 = vpop.f32.mrb[0].mxu0
        %v957 = vadd.f32 0.0, %v956
        %958 = vdwg.mxu0
        %959 = vmatprep.subr.mxu0 %v827
        %960 = vmatpush1.msra.mxu0 %v826
        %961 = vmatprep.subr.mxu0 %v831
        %962 = vmatpush1.msra.mxu0 %v830
        %963 = vmatprep.subr.mxu0 %v835
        %964 = vmatpush1.msra.mxu0 %v834
        %965 = vmatprep.subr.mxu0 %v839
        %966 = vmatpush1.msra.mxu0 %v838
        %967 = vmatprep.subr.mxu0 %v843
        %968 = vmatpush1.msra.mxu0 %v842
        %969 = vmatprep.subr.mxu0 %v847
        %970 = vmatpush1.msra.mxu0 %v846
        %971 = vmatprep.subr.mxu0 %v851
        %972 = vmatpush1.msra.mxu0 %v850
        %973 = vmatprep.subr.mxu0 %v855
        %974 = vmatpush1.msra.mxu0 %v854
        %975 = vmatprep.subr.mxu0 %v859
        %976 = vmatpush1.msra.mxu0 %v858
        %977 = vmatprep.subr.mxu0 %v863
        %978 = vmatpush1.msra.mxu0 %v862
        %979 = vmatprep.subr.mxu0 %v867
        %980 = vmatpush1.msra.mxu0 %v866
        %981 = vmatprep.subr.mxu0 %v871
        %982 = vmatpush1.msra.mxu0 %v870
        %983 = vmatprep.subr.mxu0 %v875
        %984 = vmatpush1.msra.mxu0 %v874
        %985 = vmatprep.subr.mxu0 %v879
        %986 = vmatpush1.msra.mxu0 %v878
        %987 = vmatprep.subr.mxu0 %v883
        %988 = vmatpush1.msra.mxu0 %v882
        %989 = vmatprep.subr.mxu0 %v887
        %990 = vmatpush1.msra.mxu0 %v886
        %991 = vmatprep.subr.mxu0 0.0
        %992 = vmatpush1.msra.mxu0 0.0
        %993 = vmatprep.subr.mxu0 0.0
        %994 = vmatpush1.msra.mxu0 0.0
        %995 = vmatprep.subr.mxu0 0.0
        %996 = vmatpush1.msra.mxu0 0.0
        %997 = vmatprep.subr.mxu0 0.0
        %998 = vmatpush1.msra.mxu0 0.0
        %999 = vmatprep.subr.mxu0 0.0
        %1000 = vmatpush1.msra.mxu0 0.0
        %1001 = vmatprep.subr.mxu0 0.0
        %1002 = vmatpush1.msra.mxu0 0.0
        %1003 = vmatprep.subr.mxu0 0.0
        %1004 = vmatpush1.msra.mxu0 0.0
        %1005 = vmatprep.subr.mxu0 0.0
        %1006 = vmatpush1.msra.mxu0 0.0
        %1007 = vmatprep.subr.mxu0 0.0
        %1008 = vmatpush1.msra.mxu0 0.0
        %1009 = vmatprep.subr.mxu0 0.0
        %1010 = vmatpush1.msra.mxu0 0.0
        %1011 = vmatprep.subr.mxu0 0.0
        %1012 = vmatpush1.msra.mxu0 0.0
        %1013 = vmatprep.subr.mxu0 0.0
        %1014 = vmatpush1.msra.mxu0 0.0
        %1015 = vmatprep.subr.mxu0 0.0
        %1016 = vmatpush1.msra.mxu0 0.0
        %1017 = vmatprep.subr.mxu0 0.0
        %1018 = vmatpush1.msra.mxu0 0.0
        %1019 = vmatprep.subr.mxu0 0.0
        %1020 = vmatpush1.msra.mxu0 0.0
        %1021 = vmatprep.subr.mxu0 0.0
        %1022 = vmatpush1.msra.mxu0 0.0
        %1023 = vmatprep.mubr.f32.mxu0 0.0
        %1024 = vmatmul.mubr.f32.gmra.mrb[0].mxu0 %v822
        %v1025 = vpop.f32.mrb[0].mxu0
        %v1026 = vadd.f32 0.0, %v1025
        %v1027 = vpop.f32.mrb[0].mxu0
        %v1028 = vadd.f32 0.0, %v1027
        %1029 = vdwg.mxu0
        %v1030 = vadd.f32 %v817, %v955
        %v1031 = vadd.f32 %v818, %v957
        %v1032 = vadd.f32 %v819, %v1026
        %v1033 = vadd.f32 %v820, %v1028
        %v1038 = vcombine.low %v1030, %v1031
        %v1039 = vcombine.low %v1032, %v1033
        %v1041 = vunpack.c.l.s4 1983009808
        %v1042 = vunpack.c.0.s8 %v1041
        %v1043 = vlaneseq
        %v1044 = vshrl.u32 %v1043, 7
        %v1045 = vsub.s32 %v1042, %v1044
        %v1046 = vrot.slane %v1038, %v1045
        %v1048 = vunpack.c.l.s4 1983009808
        %v1049 = vunpack.c.0.s8 %v1048
        %v1050 = vlaneseq
        %v1051 = vshrl.u32 %v1050, 7
        %v1052 = vsub.s32 %v1049, %v1051
        %v1053 = vrot.slane %v1039, %v1052
        %v1054 = vcombine.low %v1046, %v1053
        %1056 = vst [vmem:[%s191] sm:$0xff] %v1054
        %p1057 = scmp.lt.s32.totalorder %s18, 1
        %s1058 = scalar_select %p1057, %s18, 1
        %p1059 = scmp.lt.s32.totalorder %s19, 0
        %s1060 = scalar_select %p1059, %s19, 0
        %s1061 = smul.addr %s1060, 4
        %s1062 = smul.addr %s1058, 4
        %s1063 = sadd.s32 %s1061, %s1062
        %s1064 = smul.addr %s1063, 2
        %s1065 = scalar_lea.vmem %s2, %s1064
        // Predicated region
        $region33: #{haar_upsampling_forward.1} parent=27 // pred_check
          %p1066 = pneg %p95
        $region34: #{haar_upsampling_forward.1} parent=27 // pred_check_branch
          %1068 = sbr.rel (%p1066) target = $region36
        $region35: #{haar_upsampling_forward.1} parent=27 // pred_region
          _
        $region36: #{haar_upsampling_forward.1} parent=27 // pred_fallthru
          _
      $region28: #{haar_upsampling_forward.1} parent=5 // pred_fallthru
        _
      %p1069 = scmp.le.s32.totalorder 2, %s9
      // Predicated region
      $region37: #{haar_upsampling_forward.1} parent=5 // pred_check
        %p1070 = pneg %p1069
      $region38: #{haar_upsampling_forward.1} parent=5 // pred_check_branch
        %1072 = sbr.rel (%p1070) target = $region40
      $region39: #{haar_upsampling_forward.1} parent=5 // pred_region
        %s1073 = ssub.s32 %s9, 2
        // Predicated region
        $region41: #{haar_upsampling_forward.1} parent=39 // pred_check
          %p1074 = pneg %p101
        $region42: #{haar_upsampling_forward.1} parent=39 // pred_check_branch
          %1076 = sbr.rel (%p1074) target = $region44
        $region43: #{haar_upsampling_forward.1} parent=39 // pred_region
          %p1077 = scmp.lt.s32.totalorder %s20, 1
          %s1078 = scalar_select %p1077, %s20, 1
          %p1079 = scmp.lt.s32.totalorder %s21, 0
          %s1080 = scalar_select %p1079, %s21, 0
          %s1081 = smul.addr %s1080, 4
          %s1082 = smul.addr %s1078, 4
          %s1083 = sadd.s32 %s1081, %s1082
          %s1084 = smul.addr %s1083, 2
          %s1085 = scalar_lea.vmem %s2, %s1084
        $region44: #{haar_upsampling_forward.1} parent=39 // pred_fallthru
          _
      $region40: #{haar_upsampling_forward.1} parent=5 // pred_fallthru
        _
    $region6: #{haar_upsampling_forward.1} parent=1 // loop_footer
      %s13 = sadd.s32 1, %s9
    $region7: #{haar_upsampling_forward.1} parent=1 // loop_footer_branch
      %8 = sbr.rel target = $region3
    $region8: #{haar_upsampling_forward.1} parent=1 // loop_exit
      _
    %1086 = vsyncpa [#allocation3], 1
    %s1087 = scalar_lea.sflag [#allocation3], 1
    %1088 = vsyncpa %s1087, 1

</llo_original>
